<compile_context>
chip_gen: v6e
topology: v6e:2x2x1
jax: 0.10.0
libtpu: 0.0.40
codegen_flags: <defaults>
</compile_context>

<pallas_src>
import functools

import jax
import jax.numpy as jnp
from jax import lax
from jax.experimental import pallas as pl
from jax.experimental.pallas import tpu as pltpu

LANES = 128
SUBLANES = 8
CHUNK_R = 512        # strip-mine chunk: per-chunk intermediates are (512,128) f32 = 256 KiB
BLOCK_R_MAX = 4096   # per-grid-step DMA block: 2 MiB f32 logits + <=2 MiB targets;
                     # double-buffered ~8 MiB, well inside VMEM on v5e/v6e/v7x.


def _ceil_to(x, m):
    return -(-x // m) * m


def _floor_to(x, m):
    return x - x % m


def _num_tensorcores():
    """2 on v7x (two TensorCores per JAX device), else 1 (v5e / v6e)."""
    try:
        kind = jax.devices()[0].device_kind.lower()
    except Exception:
        return 1
    return 2 if "v7" in kind else 1


def _focal_loss_kernel(x_ref, t_ref, acc_ref, *, gamma, alpha, block_r, chunk_r,
                       tiles_per_core, rows_full, lanes_rem):
    c = pl.program_id(0)
    i = pl.program_id(1)

    @pl.when(i == 0)
    def _init():
        acc_ref[...] = jnp.zeros_like(acc_ref)

    # Global row of this block's first row, UNclamped.  (The input index_map may
    # clamp a fully out-of-range block onto the last valid one; whatever data it
    # loads is irrelevant because every element of such a block is masked below.)
    base_row = (c * tiles_per_core + i) * block_r

    row_iota = lax.broadcasted_iota(jnp.int32, (chunk_r, LANES), 0)
    lane_iota = lax.broadcasted_iota(jnp.int32, (chunk_r, LANES), 1)

    n_chunks = block_r // chunk_r
    g = float(gamma)
    int_gamma = (g == int(g)) and 0 <= int(g) <= 8

    def chunk_body(ci, acc):
        off = pl.multiple_of(ci * chunk_r, chunk_r)
        x = x_ref[pl.ds(off, chunk_r), :].astype(jnp.float32)
        t = t_ref[pl.ds(off, chunk_r), :].astype(jnp.int32)
        pos = t == 1    # NOTE: any value other than 0/1 is treated as class 0.

        # Element-level validity (flat index < m): replaces the old full-array
        # pad.  Boundary-block rows beyond the array hold stale VMEM garbage, so
        # neutralize x before the transcendentals and zero the loss at the end.
        grow = base_row + ci * chunk_r + row_iota
        valid = (grow < rows_full) | ((grow == rows_full) & (lane_iota < lanes_rem))
        x = jnp.where(valid, x, 0.0)

        # logpt = log_sigmoid(z), z = +x for target 1 and -x for target 0.
        # min(z,0) - log1p(exp(-|z|)) is exactly jax.nn.log_sigmoid's formula;
        # pt = sigmoid(z) in rational form avoids a third transcendental.
        z = jnp.where(pos, x, -x)
        e = jnp.exp(-jnp.abs(z))            # EUP #1
        log1pe = jnp.log1p(e)               # EUP #2
        logpt = jnp.minimum(z, 0.0) - log1pe
        pt = jnp.where(z >= 0.0, 1.0, e) / (1.0 + e)

        if alpha is not None:
            # NOTE: alpha scales logpt AFTER pt was computed -- this matches the
            # (quirky) PyTorch module semantics on purpose.  Do not "fix".
            at = jnp.where(pos, jnp.float32(alpha[1]), jnp.float32(alpha[0]))
            logpt = logpt * at

        omp = jnp.maximum(1.0 - pt, 0.0)    # clamp guards pow/NaN edge
        if int_gamma:
            # Integer gamma (default gamma=2): plain VPU multiplies, no EUP pow.
            gi = int(g)
            w = jnp.ones_like(omp) if gi == 0 else omp
            for _ in range(gi - 1):
                w = w * omp
        else:
            w = omp ** jnp.float32(g)

        loss = jnp.where(valid, -w * logpt, 0.0)
        # Per-lane partial sums (pure VPU adds across vregs); the only
        # cross-lane reduce happens once in the wrapper on a tiny array.
        partial = loss.reshape(chunk_r // SUBLANES, SUBLANES, LANES).sum(axis=0)
        return acc + partial

    acc = lax.fori_loop(0, n_chunks, chunk_body,
                        jnp.zeros((SUBLANES, LANES), jnp.float32), unroll=True)
    acc_ref[...] += acc


def focal_loss(logits, target, *, gamma=2.0, alpha=None, size_average=True):
    """Pallas focal loss, binary (num_classes == 2) path of the PyTorch module.

    logits: (N, 1, H, W) float (f32 or bf16, streamed in native dtype);
    target: (N, H, W) integers in {0, 1} (streamed in native dtype).
    """
    if isinstance(alpha, (float, int)):
        alpha = (float(alpha), 1.0 - float(alpha))
    elif isinstance(alpha, (list, tuple)):
        alpha = tuple(float(a) for a in alpha)

    if logits.ndim < 2 or logits.shape[1] != 1:
        # TODO(synk): num_classes > 2 path not implemented (binary path only).
        raise NotImplementedError("focal_loss: only the binary (C == 1) path is implemented")

    # The module's (N,C,HW) -> (N,HW,C) -> (-1) flattening is a pure reshape
    # when C == 1 (transpose of a size-1 axis): no transpose / cast pass here.
    x = logits.reshape(-1)
    if not jnp.issubdtype(x.dtype, jnp.floating):
        x = x.astype(jnp.float32)
    t = target.reshape(-1)
    m = x.shape[0]

    # Pad only the last partial 128-lane row, or tiny (<32-row) inputs up to one
    # minimal 32-row block.  Lane-aligned inputs of any real size take no pad
    # pass at all; validity is decided in-kernel from the flat element index,
    # so the pad value is irrelevant.
    padded_len = max(_ceil_to(m, LANES), 32 * LANES)
    if padded_len != m:
        x = jnp.pad(x, (0, padded_len - m))
        t = jnp.pad(t, (0, padded_len - m))
    rows = padded_len // LANES
    x2 = x.reshape(rows, LANES)
    t2 = t.reshape(rows, LANES)

    # Work split: leading "parallel" axis over TensorCores (only v7x gets 2),
    # reduction axis last.  block_r is a multiple of 32 (and of CHUNK_R when
    # larger than one chunk) and never exceeds `rows`, so boundary blocks are
    # the standard partial-edge-block case.
    n_cores = _num_tensorcores()
    while True:
        per_core = -(-rows // n_cores)
        block_r = max(32, min(BLOCK_R_MAX, _floor_to(per_core, 32)))
        if block_r > CHUNK_R:
            block_r = _floor_to(block_r, CHUNK_R)
        tiles_per_core = -(-rows // (block_r * n_cores))
        if n_cores == 1 or tiles_per_core * block_r < rows:
            break
        n_cores -= 1   # splitting would leave the second core with no valid rows

    chunk_r = min(CHUNK_R, block_r)
    n_row_blocks = -(-rows // block_r)
    needs_clamp = n_cores * tiles_per_core > n_row_blocks

    if needs_clamp:
        # A (rare) fully out-of-range block is redirected onto the last valid
        # block so its DMA stays in bounds; the in-kernel mask zeroes it out.
        def in_index_map(c, i):
            return (jnp.minimum(c * tiles_per_core + i, n_row_blocks - 1), 0)
    else:
        def in_index_map(c, i):
            return (c * tiles_per_core + i, 0)

    kernel = functools.partial(
        _focal_loss_kernel, gamma=float(gamma), alpha=alpha, block_r=block_r,
        chunk_r=chunk_r, tiles_per_core=tiles_per_core,
        rows_full=m // LANES, lanes_rem=m % LANES)

    partials = pl.pallas_call(
        kernel,
        out_shape=jax.ShapeDtypeStruct((n_cores * SUBLANES, LANES), jnp.float32),
        grid=(n_cores, tiles_per_core),
        in_specs=[
            pl.BlockSpec((block_r, LANES), in_index_map),
            pl.BlockSpec((block_r, LANES), in_index_map),
        ],
        out_specs=pl.BlockSpec((SUBLANES, LANES), lambda c, i: (c, 0)),
        compiler_params=pltpu.CompilerParams(
            dimension_semantics=("parallel", "arbitrary"),
            vmem_limit_bytes=32 * 1024 * 1024),
    )(x2, t2)

    # One tiny cross-lane reduce on (n_cores*8, 128).  Folding it into the last
    # grid step only matters for us-scale inputs, so it stays in the wrapper.
    total = jnp.sum(partials)
    if size_average:
        total = total / jnp.float32(m)
    return total


def focal_loss_ref(logits, target, *, gamma=2.0, alpha=None, size_average=True):
    """Pure-JAX reference mirroring the PyTorch module (binary path)."""
    if isinstance(alpha, (float, int)):
        alpha = [float(alpha), 1.0 - float(alpha)]
    x = logits.reshape(logits.shape[0], logits.shape[1], -1)
    x = jnp.transpose(x, (0, 2, 1)).reshape(-1, 1).astype(jnp.float32)
    t = target.reshape(-1).astype(jnp.int32)
    logpt = jnp.stack([jax.nn.log_sigmoid(-x), jax.nn.log_sigmoid(x)], axis=1)
    logpt = jnp.squeeze(logpt, axis=2)                       # (M, 2)
    logpt = jnp.take_along_axis(logpt, t[:, None], axis=1).reshape(-1)
    pt = jnp.exp(logpt)
    if alpha is not None:
        at = jnp.asarray(alpha, jnp.float32)[t]
        logpt = logpt * at
    loss = -((1.0 - pt) ** gamma) * logpt
    return loss.mean() if size_average else loss.sum()


if __name__ == "__main__":
    key = jax.random.PRNGKey(0)
    k1, k2, k3, k4, k5, k6 = jax.random.split(key, 6)

    # Primary shape: binary segmentation-style logits, one logit per pixel.
    N, C, H, W = 2, 1, 16, 16
    logits = jax.random.normal(k1, (N, C, H, W), dtype=jnp.float32)
    target = jax.random.bernoulli(k2, 0.5, (N, H, W)).astype(jnp.int32)

    # Default FocalLoss(): gamma=2, alpha=None, size_average=True, num_classes=2.
    out = focal_loss(logits, target, gamma=2.0, alpha=None, size_average=True)
    out = jax.block_until_ready(out)
    ref = focal_loss_ref(logits, target, gamma=2.0, alpha=None, size_average=True)
    assert jnp.allclose(out, ref, atol=1e-5, rtol=1e-5), (out, ref)

    # Alpha-weighted, sum-reduction variant.
    out_a = focal_loss(logits, target, gamma=2.0, alpha=0.25, size_average=False)
    out_a = jax.block_until_ready(out_a)
    ref_a = focal_loss_ref(logits, target, gamma=2.0, alpha=0.25, size_average=False)
    assert jnp.allclose(out_a, ref_a, atol=1e-4, rtol=1e-5), (out_a, ref_a)

    # Non-integer gamma path (uses pow) for coverage.
    out_g = focal_loss(logits, target, gamma=1.5, alpha=None, size_average=True)
    out_g = jax.block_until_ready(out_g)
    ref_g = focal_loss_ref(logits, target, gamma=1.5, alpha=None, size_average=True)
    assert jnp.allclose(out_g, ref_g, atol=1e-5, rtol=1e-5), (out_g, ref_g)

    # Non-lane-aligned element count: exercises the partial-row lane mask.
    lg_o = jax.random.normal(k3, (1, 1, 100, 33), dtype=jnp.float32)
    tg_o = jax.random.bernoulli(k4, 0.4, (1, 100, 33)).astype(jnp.int32)
    out_o = jax.block_until_ready(focal_loss(lg_o, tg_o))
    ref_o = focal_loss_ref(lg_o, tg_o)
    assert jnp.allclose(out_o, ref_o, atol=1e-5, rtol=1e-4), (out_o, ref_o)

    # Larger input: exercises multi-block accumulation, in-kernel strip-mining
    # and partial-edge-block row masking.
    lg_b = jax.random.normal(k5, (4, 1, 128, 160), dtype=jnp.float32)
    tg_b = jax.random.bernoulli(k6, 0.3, (4, 128, 160)).astype(jnp.int32)
    out_b = jax.block_until_ready(focal_loss(lg_b, tg_b))
    ref_b = focal_loss_ref(lg_b, tg_b)
    assert jnp.allclose(out_b, ref_b, atol=1e-5, rtol=1e-4), (out_b, ref_b)

    print("KERNEL_OK")
</pallas_src>

<mosaic_0001>
module attributes {stable_mosaic.version = 11 : i64} {
  func.func @_focal_loss_kernel(%arg0: i32, %arg1: i32, %arg2: memref<32x128xf32, #tpu.memory_space<vmem>>, %arg3: memref<32x128xi32, #tpu.memory_space<vmem>>, %arg4: memref<8x128xf32, #tpu.memory_space<vmem>>) attributes {dimension_semantics = [#tpu.dimension_semantics<parallel>, #tpu.dimension_semantics<arbitrary>], iteration_bounds = array<i64: 1, 1>, scalar_prefetch = 0 : i64, scratch_operands = 0 : i64, tpu.core_type = #tpu.core_type<tc>, window_params = [{transform_indices = @transform_0, window_bounds = array<i64: 32, 128>}, {transform_indices = @transform_1, window_bounds = array<i64: 32, 128>}, {transform_indices = @transform_2, window_bounds = array<i64: 8, 128>}]} {
    %c0_i32 = arith.constant 0 : i32
    %0 = arith.cmpi eq, %arg1, %c0_i32 : i32
    %1 = arith.extui %0 : i1 to i32
    %c0_i32_0 = arith.constant 0 : i32
    %2 = arith.cmpi ne, %1, %c0_i32_0 : i32
    scf.if %2 {
      %cst_25 = arith.constant 0.000000e+00 : f32
      %65 = vector.broadcast %cst_25 : f32 to vector<8x128xf32>
      %c0_26 = arith.constant 0 : index
      %c0_27 = arith.constant 0 : index
      %66 = vector.load %arg4[%c0_26, %c0_27] : memref<8x128xf32, #tpu.memory_space<vmem>>, vector<8x128xf32>
      tpu.vector_store %arg4[%c0_26, %c0_27], %65 {strides = array<i32>} : memref<8x128xf32, #tpu.memory_space<vmem>>, vector<8x128xf32>,
    } else {
    }
    %c1_i32 = arith.constant 1 : i32
    %3 = arith.muli %arg0, %c1_i32 : i32
    %4 = arith.addi %3, %arg1 : i32
    %c32_i32 = arith.constant 32 : i32
    %5 = arith.muli %4, %c32_i32 : i32
    %6 = tpu.iota {dimensions = array<i32: 0>} : vector<32x128xi32>
    %7 = tpu.iota {dimensions = array<i32: 1>} : vector<32x128xi32>
    %cst = arith.constant 0.000000e+00 : f32
    %8 = vector.broadcast %cst : f32 to vector<8x128xf32>
    %c0_i32_1 = arith.constant 0 : i32
    %c32_i32_2 = arith.constant 32 : i32
    %9 = arith.muli %c0_i32_1, %c32_i32_2 : i32
    %10 = tpu.assume_multiple %9, 32 : i32
    %11 = arith.index_cast %10 : i32 to index
    %c0 = arith.constant 0 : index
    %12 = vector.load %arg2[%11, %c0] : memref<32x128xf32, #tpu.memory_space<vmem>>, vector<32x128xf32>
    %13 = arith.index_cast %10 : i32 to index
    %c0_3 = arith.constant 0 : index
    %14 = vector.load %arg3[%13, %c0_3] : memref<32x128xi32, #tpu.memory_space<vmem>>, vector<32x128xi32>
    %c1_i32_4 = arith.constant 1 : i32
    %15 = vector.broadcast %c1_i32_4 : i32 to vector<32x128xi32>
    %16 = arith.cmpi eq, %14, %15 : vector<32x128xi32>
    %c32_i32_5 = arith.constant 32 : i32
    %17 = arith.muli %c0_i32_1, %c32_i32_5 : i32
    %18 = arith.addi %5, %17 : i32
    %19 = vector.broadcast %18 : i32 to vector<32x128xi32>
    %20 = arith.addi %19, %6 : vector<32x128xi32>
    %c4_i32 = arith.constant 4 : i32
    %21 = vector.broadcast %c4_i32 : i32 to vector<32x128xi32>
    %22 = arith.cmpi slt, %20, %21 : vector<32x128xi32>
    %c4_i32_6 = arith.constant 4 : i32
    %23 = vector.broadcast %c4_i32_6 : i32 to vector<32x128xi32>
    %24 = arith.cmpi eq, %20, %23 : vector<32x128xi32>
    %c0_i32_7 = arith.constant 0 : i32
    %25 = vector.broadcast %c0_i32_7 : i32 to vector<32x128xi32>
    %26 = arith.cmpi slt, %7, %25 : vector<32x128xi32>
    %27 = arith.andi %24, %26 : vector<32x128xi1>
    %28 = arith.ori %22, %27 : vector<32x128xi1>
    %cst_8 = arith.constant 0.000000e+00 : f32
    %29 = vector.broadcast %cst_8 : f32 to vector<32x128xf32>
    %30 = arith.select %28, %12, %29 : vector<32x128xi1>, vector<32x128xf32>
    %cst_9 = arith.constant 0.000000e+00 : f32
    %31 = vector.broadcast %cst_9 : f32 to vector<32x128xf32>
    %32 = arith.subf %31, %30 : vector<32x128xf32>
    %33 = arith.select %16, %30, %32 : vector<32x128xi1>, vector<32x128xf32>
    %34 = math.absf %33 : vector<32x128xf32>
    %cst_10 = arith.constant 0.000000e+00 : f32
    %35 = vector.broadcast %cst_10 : f32 to vector<32x128xf32>
    %36 = arith.subf %35, %34 : vector<32x128xf32>
    %37 = math.exp %36 : vector<32x128xf32>
    %38 = math.log1p %37 : vector<32x128xf32>
    %cst_11 = arith.constant 0.000000e+00 : f32
    %39 = vector.broadcast %cst_11 : f32 to vector<32x128xf32>
    %40 = arith.minimumf %33, %39 : vector<32x128xf32>
    %41 = arith.subf %40, %38 : vector<32x128xf32>
    %cst_12 = arith.constant 0.000000e+00 : f32
    %42 = vector.broadcast %cst_12 : f32 to vector<32x128xf32>
    %43 = arith.cmpf oge, %33, %42 : vector<32x128xf32>
    %cst_13 = arith.constant 1.000000e+00 : f32
    %44 = vector.broadcast %cst_13 : f32 to vector<32x128xf32>
    %45 = arith.select %43, %44, %37 : vector<32x128xi1>, vector<32x128xf32>
    %cst_14 = arith.constant 1.000000e+00 : f32
    %46 = vector.broadcast %cst_14 : f32 to vector<32x128xf32>
    %47 = arith.addf %46, %37 : vector<32x128xf32>
    %48 = arith.divf %45, %47 : vector<32x128xf32>
    %cst_15 = arith.constant 1.000000e+00 : f32
    %49 = vector.broadcast %cst_15 : f32 to vector<32x128xf32>
    %50 = arith.subf %49, %48 : vector<32x128xf32>
    %cst_16 = arith.constant 0.000000e+00 : f32
    %51 = vector.broadcast %cst_16 : f32 to vector<32x128xf32>
    %52 = arith.maximumf %50, %51 : vector<32x128xf32>
    %53 = arith.mulf %52, %52 : vector<32x128xf32>
    %cst_17 = arith.constant 0.000000e+00 : f32
    %54 = vector.broadcast %cst_17 : f32 to vector<32x128xf32>
    %55 = arith.subf %54, %53 : vector<32x128xf32>
    %56 = arith.mulf %55, %41 : vector<32x128xf32>
    %cst_18 = arith.constant 0.000000e+00 : f32
    %57 = vector.broadcast %cst_18 : f32 to vector<32x128xf32>
    %58 = arith.select %28, %56, %57 : vector<32x128xi1>, vector<32x128xf32>
    %59 = vector.shape_cast %58 : vector<32x128xf32> to vector<4x8x128xf32>
    %cst_19 = arith.constant dense<0.000000e+00> : vector<8x128xf32>
    %60 = vector.multi_reduction <add>, %59, %cst_19 [0] : vector<4x8x128xf32> to vector<8x128xf32>
    %61 = arith.addf %8, %60 : vector<8x128xf32>
    %c1_i32_20 = arith.constant 1 : i32
    %c0_21 = arith.constant 0 : index
    %c0_22 = arith.constant 0 : index
    %62 = vector.load %arg4[%c0_21, %c0_22] : memref<8x128xf32, #tpu.memory_space<vmem>>, vector<8x128xf32>
    %63 = arith.addf %62, %61 : vector<8x128xf32>
    %c0_23 = arith.constant 0 : index
    %c0_24 = arith.constant 0 : index
    %64 = vector.load %arg4[%c0_23, %c0_24] : memref<8x128xf32, #tpu.memory_space<vmem>>, vector<8x128xf32>
    tpu.vector_store %arg4[%c0_23, %c0_24], %63 {strides = array<i32>} : memref<8x128xf32, #tpu.memory_space<vmem>>, vector<8x128xf32>,
    return
  }
  func.func @transform_0(%arg0: i32, %arg1: i32) -> (i32, i32) {
    %c1_i32 = arith.constant 1 : i32
    %0 = arith.muli %arg0, %c1_i32 : i32
    %1 = arith.addi %0, %arg1 : i32
    %c0_i32 = arith.constant 0 : i32
    %c0_i32_0 = arith.constant 0 : i32
    return %1, %c0_i32 : i32, i32
  }
  func.func @transform_1(%arg0: i32, %arg1: i32) -> (i32, i32) {
    %c1_i32 = arith.constant 1 : i32
    %0 = arith.muli %arg0, %c1_i32 : i32
    %1 = arith.addi %0, %arg1 : i32
    %c0_i32 = arith.constant 0 : i32
    %c0_i32_0 = arith.constant 0 : i32
    return %1, %c0_i32 : i32, i32
  }
  func.func @transform_2(%arg0: i32, %arg1: i32) -> (i32, i32) {
    %c0_i32 = arith.constant 0 : i32
    %c0_i32_0 = arith.constant 0 : i32
    return %arg0, %c0_i32 : i32, i32
  }
}

</mosaic_0001>

<llo_original>
// kernel: tpu_custom_call.1
$region0: #{tpu_custom_call.1}
  #allocation0 [shape = 'u32[]', space=smem, size = 0x4, offset = 0x4, fixed_abs, tag = 'smem constant byte address 0x4 - core index']
  #allocation1 [shape = 'u32[144,128]{1,0:T(1,128)}', space=vmem, size = 0x12000, scoped, tag = 'internal scratch']
  %s0 = inlined_call_operand.hbm [shape: f32[32,128], index: 0, kind: input, shape index: {}]
  %s1 = inlined_call_operand.hbm [shape: s32[32,128], index: 1, kind: input, shape index: {}]
  %s2 = inlined_call_operand.hbm [shape: f32[8,128], index: 2, kind: output, shape index: {}]
  %s3 = sld [smem:[#allocation0]]
  $region30: #{tpu_custom_call.1} parent=0
    _
  %s5 = ssub.s32 1, %s3
  %s6 = scalar_select 0, %s5, %s3
  $region1: #{tpu_custom_call.1} parent=0
    #allocation2 [shape = 'u8[16384]{0}', space=vmem, size = 0x4000, scoped, tag = 'input window, operand 0, single buffered']
    #allocation3 [shape = 's32[1]{0}', space=sflag, size = 0x4, scoped, tag = 'scoped memory for tpu_custom_call.1']
    #allocation4 [shape = 's32[1]{0}', space=sflag, size = 0x4, scoped, tag = 'scoped memory for tpu_custom_call.1']
    #allocation5 [shape = 'u8[16384]{0}', space=vmem, size = 0x4000, scoped, tag = 'input window, operand 1, single buffered']
    #allocation6 [shape = 's32[1]{0}', space=sflag, size = 0x4, scoped, tag = 'scoped memory for tpu_custom_call.1']
    #allocation7 [shape = 'u8[4096]{0}', space=vmem, size = 0x1000, scoped, tag = 'output window, operand 0, single buffered']
    %7 = vsyncpa [#allocation3], 0
    %8 = vsyncpa [#allocation6], 0
    %9 = vsyncpa [#allocation4], 0
    // Predicated region
    $region2: #{tpu_custom_call.1} parent=1 // pred_check
      _
    $region3: #{tpu_custom_call.1} parent=1 // pred_check_branch
      %11 = sbr.rel (0) target = $region5
    $region4: #{tpu_custom_call.1} parent=1 // pred_region
      %s12 = sadd.s32 0, 0
      %s13 = smul.u32 4, %s12
      %s15 = ssub.s32 512, 512
      %16 = vsyncadd [#allocation3], %s15
      %s17 = smul.addr %s13, 128
      %s18 = scalar_lea.hbm %s0, %s17
      %s19 = sshll.u32 [#allocation2], 4
      %s20 = int_to_ptr.vmem [resolvable:$true] %s19
      %25 = dma.hbm_to_vmem [thread:$0]  %s18, 512, %s20, [#allocation3], 128, 128, 8
    $region5: #{tpu_custom_call.1} parent=1 // pred_fallthru
      _
    // Predicated region
    $region6: #{tpu_custom_call.1} parent=1 // pred_check
      _
    $region7: #{tpu_custom_call.1} parent=1 // pred_check_branch
      %27 = sbr.rel (0) target = $region9
    $region8: #{tpu_custom_call.1} parent=1 // pred_region
      %s28 = sadd.s32 0, 0
      %s29 = smul.u32 4, %s28
      %s31 = ssub.s32 512, 512
      %32 = vsyncadd [#allocation6], %s31
      %s33 = smul.addr %s29, 128
      %s34 = scalar_lea.hbm %s1, %s33
      %s35 = sshll.u32 [#allocation5], 4
      %s36 = int_to_ptr.vmem [resolvable:$true] %s35
      %41 = dma.hbm_to_vmem [thread:$0]  %s34, 512, %s36, [#allocation6], 128, 128, 8
    $region9: #{tpu_custom_call.1} parent=1 // pred_fallthru
      _
    // Predicated region
    $region10: #{tpu_custom_call.1} parent=1 // pred_check
      _
    $region11: #{tpu_custom_call.1} parent=1 // pred_check_branch
      %43 = sbr.rel (0) target = $region13
    $region12: #{tpu_custom_call.1} parent=1 // pred_region
      %44 = dma.done [#allocation3], 512
    $region13: #{tpu_custom_call.1} parent=1 // pred_fallthru
      _
    // Predicated region
    $region14: #{tpu_custom_call.1} parent=1 // pred_check
      _
    $region15: #{tpu_custom_call.1} parent=1 // pred_check_branch
      %46 = sbr.rel (0) target = $region17
    $region16: #{tpu_custom_call.1} parent=1 // pred_region
      %47 = dma.done [#allocation6], 512
    $region17: #{tpu_custom_call.1} parent=1 // pred_fallthru
      _
    %s48 = sadd.s32 0, 0
    %s49 = smul.u32 4, %s48
    %s50 = sadd.s32 0, 0
    %s51 = smul.u32 4, %s50
    %p52 = scmp.eq.s32.totalorder 0, 0
    // Predicated region
    $region18: #{tpu_custom_call.1} parent=1 // pred_check
      %p53 = pneg %p52
    $region19: #{tpu_custom_call.1} parent=1 // pred_check_branch
      %55 = sbr.rel (%p53) target = $region21
    $region20: #{tpu_custom_call.1} parent=1 // pred_region
      %56 = vst [vmem:[#allocation7] sm:$0xff] 0.0
    $region21: #{tpu_custom_call.1} parent=1 // pred_fallthru
      _
    %s57 = sadd.s32 0, 0
    %s58 = smul.u32 %s57, 32
    %v59 = vlaneseq
    %v60 = vshrl.u32 %v59, 7
    %v61 = vadd.s32 %v60, 8
    %v62 = vadd.s32 %v60, 16
    %v63 = vadd.s32 %v60, 24
    %v64 = vlaneseq
    %v65 = vand.u32 %v64, 127
    %v66 = vld [vmem:[#allocation2] sm:$0xff]
    %v67 = vld [vmem:[#allocation2 + $0x8] sm:$0xff]
    %v68 = vld [vmem:[#allocation2 + $0x10] sm:$0xff]
    %v69 = vld [vmem:[#allocation2 + $0x18] sm:$0xff]
    %v70 = vld [vmem:[#allocation5] sm:$0xff]
    %v71 = vld [vmem:[#allocation5 + $0x8] sm:$0xff]
    %v72 = vld [vmem:[#allocation5 + $0x10] sm:$0xff]
    %v73 = vld [vmem:[#allocation5 + $0x18] sm:$0xff]
    %vm74 = vcmp.eq.s32.totalorder %v70, 1
    %vm75 = vcmp.eq.s32.totalorder %v71, 1
    %vm76 = vcmp.eq.s32.totalorder %v72, 1
    %vm77 = vcmp.eq.s32.totalorder %v73, 1
    %v78 = vstv %s58
    %v79 = vadd.s32 %v78, %v60
    %v80 = vadd.s32 %v78, %v61
    %v81 = vadd.s32 %v78, %v62
    %v82 = vadd.s32 %v78, %v63
    %vm83 = vcmp.lt.s32.totalorder %v79, 4
    %vm84 = vcmp.lt.s32.totalorder %v80, 4
    %vm85 = vcmp.lt.s32.totalorder %v81, 4
    %vm86 = vcmp.lt.s32.totalorder %v82, 4
    %vm87 = vcmp.eq.s32.totalorder %v79, 4
    %vm88 = vcmp.eq.s32.totalorder %v80, 4
    %vm89 = vcmp.eq.s32.totalorder %v81, 4
    %vm90 = vcmp.eq.s32.totalorder %v82, 4
    %vm91 = vcmp.lt.s32.totalorder %v65, 0
    %vm92 = vmand %vm87, %vm91
    %vm93 = vmand %vm88, %vm91
    %vm94 = vmand %vm89, %vm91
    %vm95 = vmand %vm90, %vm91
    %vm96 = vmor %vm83, %vm92
    %vm97 = vmor %vm84, %vm93
    %vm98 = vmor %vm85, %vm94
    %vm99 = vmor %vm86, %vm95
    %v100 = vsel %vm96, %v66, 0.0
    %v101 = vsel %vm97, %v67, 0.0
    %v102 = vsel %vm98, %v68, 0.0
    %v103 = vsel %vm99, %v69, 0.0
    %v104 = vsub.f32 0.0, %v100
    %v105 = vsub.f32 0.0, %v101
    %v106 = vsub.f32 0.0, %v102
    %v107 = vsub.f32 0.0, %v103
    %v108 = vsel %vm74, %v100, %v104
    %v109 = vsel %vm75, %v101, %v105
    %v110 = vsel %vm76, %v102, %v106
    %v111 = vsel %vm77, %v103, %v107
    %v112 = vand.u32 2147483647, %v108
    %v113 = vand.u32 2147483647, %v109
    %v114 = vand.u32 2147483647, %v110
    %v115 = vand.u32 2147483647, %v111
    %v116 = vsub.f32 0.0, %v112
    %v117 = vsub.f32 0.0, %v113
    %v118 = vsub.f32 0.0, %v114
    %v119 = vsub.f32 0.0, %v115
    %v120 = vmul.f32 %v116, 1.442695
    %v121 = vpow.pop %v120
    %v122 = vmul.f32 %v117, 1.442695
    %v123 = vpow.pop %v122
    %v124 = vmul.f32 %v118, 1.442695
    %v125 = vpow.pop %v124
    %v126 = vmul.f32 %v119, 1.442695
    %v127 = vpow.pop %v126
    %v128 = vadd.f32 %v121, 1.0
    %v129 = vlog2.pop %v128
    %v130 = vmul.f32 %v129, 0.6931472
    %v131 = vmul.f32 -0.5, %v121
    %v132 = vadd.f32 %v131, 1.0
    %v133 = vmul.f32 %v132, %v121
    %v134 = vand.u32 2147483647, %v121
    %vm135 = vcmp.lt.f32.partialorder %v134, 0.0004427343
    %v136 = vsel %vm135, %v133, %v130
    %v137 = vadd.f32 %v123, 1.0
    %v138 = vlog2.pop %v137
    %v139 = vmul.f32 %v138, 0.6931472
    %v140 = vmul.f32 -0.5, %v123
    %v141 = vadd.f32 %v140, 1.0
    %v142 = vmul.f32 %v141, %v123
    %v143 = vand.u32 2147483647, %v123
    %vm144 = vcmp.lt.f32.partialorder %v143, 0.0004427343
    %v145 = vsel %vm144, %v142, %v139
    %v146 = vadd.f32 %v125, 1.0
    %v147 = vlog2.pop %v146
    %v148 = vmul.f32 %v147, 0.6931472
    %v149 = vmul.f32 -0.5, %v125
    %v150 = vadd.f32 %v149, 1.0
    %v151 = vmul.f32 %v150, %v125
    %v152 = vand.u32 2147483647, %v125
    %vm153 = vcmp.lt.f32.partialorder %v152, 0.0004427343
    %v154 = vsel %vm153, %v151, %v148
    %v155 = vadd.f32 %v127, 1.0
    %v156 = vlog2.pop %v155
    %v157 = vmul.f32 %v156, 0.6931472
    %v158 = vmul.f32 -0.5, %v127
    %v159 = vadd.f32 %v158, 1.0
    %v160 = vmul.f32 %v159, %v127
    %v161 = vand.u32 2147483647, %v127
    %vm162 = vcmp.lt.f32.partialorder %v161, 0.0004427343
    %v163 = vsel %vm162, %v160, %v157
    %v164 = vmin.f32 %v108, 0.0
    %v165 = vmin.f32 %v109, 0.0
    %v166 = vmin.f32 %v110, 0.0
    %v167 = vmin.f32 %v111, 0.0
    %v168 = vsub.f32 %v164, %v136
    %v169 = vsub.f32 %v165, %v145
    %v170 = vsub.f32 %v166, %v154
    %v171 = vsub.f32 %v167, %v163
    %vm172 = vcmp.ge.f32.partialorder %v108, 0.0
    %vm173 = vcmp.ge.f32.partialorder %v109, 0.0
    %vm174 = vcmp.ge.f32.partialorder %v110, 0.0
    %vm175 = vcmp.ge.f32.partialorder %v111, 0.0
    %v176 = vsel %vm172, 1.0, %v121
    %v177 = vsel %vm173, 1.0, %v123
    %v178 = vsel %vm174, 1.0, %v125
    %v179 = vsel %vm175, 1.0, %v127
    %v180 = vadd.f32 %v121, 1.0
    %v181 = vadd.f32 %v123, 1.0
    %v182 = vadd.f32 %v125, 1.0
    %v183 = vadd.f32 %v127, 1.0
    %v184 = vrcp.pop %v180
    %v185 = vmul.f32 %v176, %v184
    %v186 = vrcp.pop %v181
    %v187 = vmul.f32 %v177, %v186
    %v188 = vrcp.pop %v182
    %v189 = vmul.f32 %v178, %v188
    %v190 = vrcp.pop %v183
    %v191 = vmul.f32 %v179, %v190
    %v192 = vsub.f32 1.0, %v185
    %v193 = vsub.f32 1.0, %v187
    %v194 = vsub.f32 1.0, %v189
    %v195 = vsub.f32 1.0, %v191
    %v196 = vmax.f32 %v192, 0.0
    %v197 = vmax.f32 %v193, 0.0
    %v198 = vmax.f32 %v194, 0.0
    %v199 = vmax.f32 %v195, 0.0
    %v200 = vmul.f32 %v196, %v196
    %v201 = vmul.f32 %v197, %v197
    %v202 = vmul.f32 %v198, %v198
    %v203 = vmul.f32 %v199, %v199
    %v204 = vsub.f32 0.0, %v200
    %v205 = vsub.f32 0.0, %v201
    %v206 = vsub.f32 0.0, %v202
    %v207 = vsub.f32 0.0, %v203
    %v208 = vmul.f32 %v204, %v168
    %v209 = vmul.f32 %v205, %v169
    %v210 = vmul.f32 %v206, %v170
    %v211 = vmul.f32 %v207, %v171
    %v212 = vsel %vm96, %v208, 0.0
    %v213 = vsel %vm97, %v209, 0.0
    %v214 = vsel %vm98, %v210, 0.0
    %v215 = vsel %vm99, %v211, 0.0
    %v216 = vadd.f32 %v212, %v213
    %v217 = vadd.f32 %v216, %v214
    %v218 = vadd.f32 %v217, %v215
    %v219 = vadd.f32 %v218, 0.0
    %v220 = vld [vmem:[#allocation7] sm:$0xff]
    %v221 = vadd.f32 %v220, %v219
    %222 = vst [vmem:[#allocation7] sm:$0xff] %v221
    // Predicated region
    $region22: #{tpu_custom_call.1} parent=1 // pred_check
      _
    $region23: #{tpu_custom_call.1} parent=1 // pred_check_branch
      %224 = sbr.rel (0) target = $region25
    $region24: #{tpu_custom_call.1} parent=1 // pred_region
      %s226 = ssub.s32 128, 128
      %227 = vsyncadd [#allocation4], %s226
      %s229 = sshll.u32 [#allocation7], 4
      %s230 = int_to_ptr.vmem [resolvable:$true] %s229
      %232 = dma.vmem_to_hbm [thread:$0]  %s230, 128, %s2, [#allocation4]
    $region25: #{tpu_custom_call.1} parent=1 // pred_fallthru
      _
    // Predicated region
    $region26: #{tpu_custom_call.1} parent=1 // pred_check
      _
    $region27: #{tpu_custom_call.1} parent=1 // pred_check_branch
      %234 = sbr.rel (0) target = $region29
    $region28: #{tpu_custom_call.1} parent=1 // pred_region
      %235 = dma.done [#allocation4], 128
    $region29: #{tpu_custom_call.1} parent=1 // pred_fallthru
      _
    %236 = vsyncpa [#allocation3], 1
    %237 = vsyncpa [#allocation6], 1
    %238 = vsyncpa [#allocation4], 1

</llo_original>
